<compile_context>
chip_gen: v6e
topology: v6e:2x2x1
jax: 0.10.0
libtpu: 0.0.40
codegen_flags: <defaults>
</compile_context>

<pallas_src>
import math

import jax
import jax.numpy as jnp
from jax.experimental import pallas as pl
from jax.experimental.pallas import tpu as pltpu


def _round_up(x, m):
    return ((x + m - 1) // m) * m


def _cdiv(a, b):
    return (a + b - 1) // b


# --------------------------------------------------------------------------
# Hardware probing (trace-time, with conservative fallbacks).
# --------------------------------------------------------------------------
def _tpu_vmem_and_cores():
    """Returns (physical VMEM bytes, TensorCores per chip)."""
    vmem = None
    try:
        vmem = int(pltpu.get_tpu_info().vmem_capacity_bytes)
    except Exception:
        vmem = None
    kind = ""
    try:
        kind = jax.devices()[0].device_kind.lower()
    except Exception:
        pass
    if vmem is None:
        # 128 MiB on v4/v5e/v5p/v6e, 64 MiB per TC on v7x; unknown -> conservative.
        vmem = (64 << 20) if ("v7" in kind or not kind) else (128 << 20)
    two_core = ("v7" in kind) or ("v4" in kind) or ("v5p" in kind)
    return vmem, (2 if two_core else 1)


def _default_vmem_limit(vmem_physical):
    # Leave headroom for compiler-internal scratch; 100 MiB on 128-MiB chips,
    # 48 MiB on v7x's 64 MiB.
    return int(min(100 << 20, max(32 << 20, vmem_physical - (16 << 20))))


def _working_set_bytes(tm, tf, hidden, x_bytes, out_bytes, n_ff_blocks):
    wt = 2                                            # bf16 weights
    xb = 2 * tm * hidden * x_bytes                    # double-buffered input tile
    wb = 2 * (hidden * tf + tf * hidden) * wt         # double-buffered weight tiles
    ob = 2 * tm * hidden * out_bytes                  # double-buffered output tile
    ab = 0 if n_ff_blocks == 1 else tm * hidden * 4   # f32 accumulator scratch
    return xb + wb + ob + ab


def _select_tiles(M, hidden, ff_dim, x_bytes, out_bytes, budget, num_cores,
                  tm_target):
    # --- row-tile candidates (descending, multiples of 16) -----------------
    tm0 = _round_up(M, 16) if M <= tm_target else tm_target
    # Dual-TC chips (v7x): ensure the "parallel" axis has >= 2 row tiles.
    if num_cores >= 2 and _cdiv(M, tm0) < 2 and M > 16:
        tm0 = _round_up(_cdiv(M, 2), 16)
    tm_cands = []
    t = tm0
    while t >= 16:
        tc = _round_up(t, 16)
        if not tm_cands or tc < tm_cands[-1]:
            tm_cands.append(tc)
        t //= 2
    if tm_cands[-1] != 16:
        tm_cands.append(16)

    # --- pass A: weight-resident (single ff block, weights DMA'd once) -----
    for tm in tm_cands:
        if tm < min(128, tm0):
            break  # don't shrink rows to absurdity just to keep weights resident
        if _working_set_bytes(tm, ff_dim, hidden, x_bytes, out_bytes, 1) <= budget:
            return tm, ff_dim

    # --- pass B: tile the ff (reduction) dimension --------------------------
    tf_cands = [c for c in (4096, 2048, 1024, 512, 256, 128) if c <= ff_dim]
    if not tf_cands:
        tf_cands = [ff_dim]  # tiny ff: weights are tiny, keep the full block
    for tm in tm_cands:
        for tf in tf_cands:
            nf = _cdiv(ff_dim, tf)
            if _working_set_bytes(tm, tf, hidden, x_bytes, out_bytes, nf) <= budget:
                return tm, tf
    # Last resort: minimal tiles; let the compiler cope.
    return tm_cands[-1], tf_cands[-1]


# --------------------------------------------------------------------------
# Kernels
# --------------------------------------------------------------------------
def _ffn_kernel_resident(x_ref, w_in_ref, w_out_ref, o_ref):
    # Single ff block: constant weight index maps -> weights DMA'd once and
    # kept VMEM-resident across all row tiles; no accumulator scratch needed.
    h = jnp.dot(x_ref[...].astype(w_in_ref.dtype), w_in_ref[...],
                preferred_element_type=jnp.float32)
    h = jnp.maximum(h, 0.0)
    # TODO(synk): training-mode dropout would use pltpu.prng_seed +
    # pltpu.stateful_bernoulli on h here; inference dropout is identity.
    y = jnp.dot(h.astype(w_out_ref.dtype), w_out_ref[...],
                preferred_element_type=jnp.float32)
    o_ref[...] = y.astype(o_ref.dtype)


def _ffn_kernel_acc(x_ref, w_in_ref, w_out_ref, o_ref, acc_ref):
    # ff dimension tiled on inner ("arbitrary") grid axis; f32 accumulator.
    f = pl.program_id(1)
    h = jnp.dot(x_ref[...].astype(w_in_ref.dtype), w_in_ref[...],
                preferred_element_type=jnp.float32)
    h = jnp.maximum(h, 0.0)
    y = jnp.dot(h.astype(w_out_ref.dtype), w_out_ref[...],
                preferred_element_type=jnp.float32)

    @pl.when(f == 0)
    def _():
        acc_ref[...] = y            # plain store: no zero-init, no first-step RMW

    @pl.when(f > 0)
    def _():
        acc_ref[...] += y

    @pl.when(f == pl.num_programs(1) - 1)
    def _():
        o_ref[...] = acc_ref[...].astype(o_ref.dtype)


# --------------------------------------------------------------------------
# Wrappers
# --------------------------------------------------------------------------
def prepare_ffn_weights(w_in, w_out, compute_dtype=jnp.bfloat16):
    """One-time weight prep (do at model init, NOT per forward call):
    transpose out of the PyTorch Linear layout and cast to the MXU dtype.
      w_in:  [ff_dim, hidden]  ->  w_in_t:  [hidden, ff_dim]
      w_out: [hidden, ff_dim]  ->  w_out_t: [ff_dim, hidden]
    """
    return (jnp.asarray(w_in.T, dtype=compute_dtype),
            jnp.asarray(w_out.T, dtype=compute_dtype))


def t5_relu_ffn(x, w_in_t, w_out_t, *, tm=None, tf=None, vmem_limit_bytes=None):
    """Fused T5ReLUFFN forward:  y = relu(x @ w_in_t) @ w_out_t.

    x:       [tokens, hidden]   any float dtype (cast to bf16 in-kernel)
    w_in_t:  [hidden, ff_dim]   pre-transposed, bf16 (see prepare_ffn_weights)
    w_out_t: [ff_dim, hidden]   pre-transposed, bf16
    Returns  [tokens, hidden] in x.dtype. Dropout is identity (inference).
    """
    M, hidden = x.shape
    hidden_w, ff_dim = w_in_t.shape
    assert hidden_w == hidden, "w_in_t must be [hidden, ff_dim]"
    assert w_out_t.shape == (ff_dim, hidden), "w_out_t must be [ff_dim, hidden]"
    out_dtype = x.dtype

    vmem_phys, num_cores = _tpu_vmem_and_cores()
    if vmem_limit_bytes is None:
        vmem_limit_bytes = _default_vmem_limit(vmem_phys)
    budget = int(vmem_limit_bytes * 0.85)

    x_bytes = jnp.dtype(x.dtype).itemsize
    out_bytes = jnp.dtype(out_dtype).itemsize

    if tm is None or tf is None:
        # Row-tile target by generation roofline: 128-MiB-VMEM chips (v5e/v6e)
        # need tm ~1024 to clear the HBM roofline when weights are re-streamed;
        # v7x (64 MiB VMEM, 3.2 TB/s) only needs ~512 and must feed 2 TCs.
        tm_target = 512 if vmem_phys <= (64 << 20) else 1024
        tm_auto, tf_auto = _select_tiles(M, hidden, ff_dim, x_bytes, out_bytes,
                                         budget, num_cores, tm_target)
        tm = tm_auto if tm is None else tm
        tf = tf_auto if tf is None else tf

    tm_eff = min(tm, _round_up(M, 16))            # multiple of 16 (bf16 packing)
    m_pad = _round_up(M, tm_eff)

    if tf >= ff_dim:
        tf_eff, ff_pad = ff_dim, ff_dim           # weight-resident path
    else:
        tf_eff = tf                               # multiple of 128 (lane aligned)
        ff_pad = _round_up(ff_dim, tf_eff)

    x_in = x
    if m_pad != M:
        x_in = jnp.pad(x_in, ((0, m_pad - M), (0, 0)))
    w_in_k, w_out_k = w_in_t, w_out_t
    if ff_pad != ff_dim:
        # zero ff columns give relu(0)=0 and contribute nothing downstream
        w_in_k = jnp.pad(w_in_t, ((0, 0), (0, ff_pad - ff_dim)))
        w_out_k = jnp.pad(w_out_t, ((0, ff_pad - ff_dim), (0, 0)))

    n_m = m_pad // tm_eff
    n_f = ff_pad // tf_eff

    if n_f == 1:
        grid = (n_m,)
        kernel = _ffn_kernel_resident
        in_specs = [
            pl.BlockSpec((tm_eff, hidden), lambda i: (i, 0)),
            pl.BlockSpec((hidden, tf_eff), lambda i: (0, 0)),   # resident
            pl.BlockSpec((tf_eff, hidden), lambda i: (0, 0)),   # resident
        ]
        out_specs = pl.BlockSpec((tm_eff, hidden), lambda i: (i, 0))
        scratch_shapes = []
        dim_sem = ("parallel",)
    else:
        grid = (n_m, n_f)
        kernel = _ffn_kernel_acc
        in_specs = [
            pl.BlockSpec((tm_eff, hidden), lambda i, f: (i, 0)),
            pl.BlockSpec((hidden, tf_eff), lambda i, f: (0, f)),
            pl.BlockSpec((tf_eff, hidden), lambda i, f: (f, 0)),
        ]
        out_specs = pl.BlockSpec((tm_eff, hidden), lambda i, f: (i, 0))
        scratch_shapes = [pltpu.VMEM((tm_eff, hidden), jnp.float32)]
        dim_sem = ("parallel", "arbitrary")
        # TODO(synk): if xprof still shows exposed DMA waits at f-step
        # boundaries once MXU-bound, try pipeline_mode=pl.Buffered(3) on the
        # two weight BlockSpecs (needs VMEM headroom).

    out = pl.pallas_call(
        kernel,
        out_shape=jax.ShapeDtypeStruct((m_pad, hidden), out_dtype),
        grid_spec=pltpu.PrefetchScalarGridSpec(
            num_scalar_prefetch=0,
            grid=grid,
            in_specs=in_specs,
            out_specs=out_specs,
            scratch_shapes=scratch_shapes,
        ),
        compiler_params=pltpu.CompilerParams(
            dimension_semantics=dim_sem,
            vmem_limit_bytes=int(vmem_limit_bytes),
        ),
    )(x_in, w_in_k, w_out_k)

    if m_pad != M:
        out = out[:M]
    return out


def _reference(x2d, w_in, w_out):
    return jnp.maximum(x2d @ w_in.T, 0.0) @ w_out.T


if __name__ == "__main__":
    # ---- Small config consistent with the module: batch=2, seq=8, hidden=32, ff=64.
    batch, seq, hidden_dim, ff_dim, num_layers = 2, 8, 32, 64, 4

    key = jax.random.PRNGKey(0)
    kx, k_in, k_out = jax.random.split(key, 3)

    x = jax.random.normal(kx, (batch, seq, hidden_dim), dtype=jnp.float32)
    # Deterministic init matching T5ReLUFFN.init_weights.
    w_in = jax.random.normal(k_in, (ff_dim, hidden_dim), dtype=jnp.float32) \
           * (1.0 / math.sqrt(hidden_dim))
    w_out = jax.random.normal(k_out, (hidden_dim, ff_dim), dtype=jnp.float32) \
            * (1.0 / math.sqrt(hidden_dim * num_layers))

    # One-time weight prep (cached across forward calls, like module params).
    w_in_t, w_out_t = prepare_ffn_weights(w_in, w_out)

    ffn = jax.jit(t5_relu_ffn)

    x2d = x.reshape(batch * seq, hidden_dim)
    y2d = ffn(x2d, w_in_t, w_out_t)
    jax.block_until_ready(y2d)
    y = y2d.reshape(batch, seq, hidden_dim)

    # bf16 MXU inputs (x, weights, and intermediate h) -> loosened tolerance.
    ref = _reference(x2d, w_in, w_out)
    assert jnp.allclose(y2d, ref, atol=2e-2, rtol=2e-2), \
        "mismatch vs reference (weight-resident path)"

    # ---- Second (still small) check forcing the ff-tiled accumulator path.
    M2, hid2, ff2 = 64, 128, 256
    k1, k2, k3 = jax.random.split(jax.random.PRNGKey(1), 3)
    x2 = jax.random.normal(k1, (M2, hid2), dtype=jnp.float32)
    w_in2 = jax.random.normal(k2, (ff2, hid2), dtype=jnp.float32) / math.sqrt(hid2)
    w_out2 = jax.random.normal(k3, (hid2, ff2), dtype=jnp.float32) \
             / math.sqrt(hid2 * num_layers)
    w_in2_t, w_out2_t = prepare_ffn_weights(w_in2, w_out2)

    y2 = t5_relu_ffn(x2, w_in2_t, w_out2_t, tm=32, tf=128)
    jax.block_until_ready(y2)
    ref2 = _reference(x2, w_in2, w_out2)
    assert jnp.allclose(y2, ref2, atol=2e-2, rtol=2e-2), \
        "mismatch vs reference (ff-tiled path)"

    print("KERNEL_OK")
</pallas_src>

<mosaic_0001>
module attributes {stable_mosaic.version = 11 : i64} {
  func.func @_ffn_kernel_resident(%arg0: i32, %arg1: memref<16x32xf32, #tpu.memory_space<vmem>>, %arg2: memref<32x64xbf16, #tpu.memory_space<vmem>>, %arg3: memref<64x32xbf16, #tpu.memory_space<vmem>>, %arg4: memref<16x32xf32, #tpu.memory_space<vmem>>) attributes {dimension_semantics = [#tpu.dimension_semantics<parallel>], iteration_bounds = array<i64: 1>, scalar_prefetch = 0 : i64, scratch_operands = 0 : i64, tpu.core_type = #tpu.core_type<tc>, window_params = [{transform_indices = @transform_0, window_bounds = array<i64: 16, 32>}, {pipeline_mode = #tpu.pipeline_mode<synchronous>, transform_indices = @transform_1, window_bounds = array<i64: 32, 64>}, {pipeline_mode = #tpu.pipeline_mode<synchronous>, transform_indices = @transform_2, window_bounds = array<i64: 64, 32>}, {transform_indices = @transform_3, window_bounds = array<i64: 16, 32>}]} {
    %c0 = arith.constant 0 : index
    %c0_0 = arith.constant 0 : index
    %0 = vector.load %arg1[%c0, %c0_0] : memref<16x32xf32, #tpu.memory_space<vmem>>, vector<16x32xf32>
    %1 = arith.truncf %0 : vector<16x32xf32> to vector<16x32xbf16>
    %c0_1 = arith.constant 0 : index
    %c0_2 = arith.constant 0 : index
    %2 = vector.load %arg2[%c0_1, %c0_2] : memref<32x64xbf16, #tpu.memory_space<vmem>>, vector<32x64xbf16>
    %cst = arith.constant dense<0.000000e+00> : vector<16x64xf32>
    %3 = tpu.matmul %1, %2, %cst {dimension_numbers = #tpu.dot_dimension_numbers<[1], [0], [0], [1], [0, 0, 1, 1], [], []>} : vector<16x32xbf16>, vector<32x64xbf16>, vector<16x64xf32> -> vector<16x64xf32>
    %cst_3 = arith.constant 0.000000e+00 : f32
    %4 = vector.broadcast %cst_3 : f32 to vector<16x64xf32>
    %5 = arith.maximumf %3, %4 : vector<16x64xf32>
    %6 = arith.truncf %5 : vector<16x64xf32> to vector<16x64xbf16>
    %c0_4 = arith.constant 0 : index
    %c0_5 = arith.constant 0 : index
    %7 = vector.load %arg3[%c0_4, %c0_5] : memref<64x32xbf16, #tpu.memory_space<vmem>>, vector<64x32xbf16>
    %cst_6 = arith.constant dense<0.000000e+00> : vector<16x32xf32>
    %8 = tpu.matmul %6, %7, %cst_6 {dimension_numbers = #tpu.dot_dimension_numbers<[1], [0], [0], [1], [0, 0, 1, 1], [], []>} : vector<16x64xbf16>, vector<64x32xbf16>, vector<16x32xf32> -> vector<16x32xf32>
    %c0_7 = arith.constant 0 : index
    %c0_8 = arith.constant 0 : index
    %9 = vector.load %arg4[%c0_7, %c0_8] : memref<16x32xf32, #tpu.memory_space<vmem>>, vector<16x32xf32>
    tpu.vector_store %arg4[%c0_7, %c0_8], %8 {strides = array<i32>} : memref<16x32xf32, #tpu.memory_space<vmem>>, vector<16x32xf32>,
    return
  }
  func.func @transform_0(%arg0: i32) -> (i32, i32) {
    %c0_i32 = arith.constant 0 : i32
    %c0_i32_0 = arith.constant 0 : i32
    return %arg0, %c0_i32 : i32, i32
  }
  func.func @transform_1(%arg0: i32) -> (i32, i32) {
    %c0_i32 = arith.constant 0 : i32
    %c0_i32_0 = arith.constant 0 : i32
    %c0_i32_1 = arith.constant 0 : i32
    return %c0_i32, %c0_i32_0 : i32, i32
  }
  func.func @transform_2(%arg0: i32) -> (i32, i32) {
    %c0_i32 = arith.constant 0 : i32
    %c0_i32_0 = arith.constant 0 : i32
    %c0_i32_1 = arith.constant 0 : i32
    return %c0_i32, %c0_i32_0 : i32, i32
  }
  func.func @transform_3(%arg0: i32) -> (i32, i32) {
    %c0_i32 = arith.constant 0 : i32
    %c0_i32_0 = arith.constant 0 : i32
    return %arg0, %c0_i32 : i32, i32
  }
}

</mosaic_0001>

<llo_original>
// kernel: t5_relu_ffn.1
$region0: #{t5_relu_ffn.1}
  #allocation0 [shape = 'u32[]', space=smem, size = 0x4, offset = 0x4, fixed_abs, tag = 'smem constant byte address 0x4 - core index']
  #allocation1 [shape = 'u32[144,128]{1,0:T(1,128)}', space=vmem, size = 0x12000, scoped, tag = 'internal scratch']
  %s0 = inlined_call_operand.vmem [shape: f32[16,32], index: 0, kind: input, shape index: {}]
  %s1 = inlined_call_operand.vmem [shape: bf16[32,64], index: 1, kind: input, shape index: {}]
  %s2 = inlined_call_operand.vmem [shape: bf16[64,32], index: 2, kind: input, shape index: {}]
  %s3 = inlined_call_operand.hbm [shape: f32[16,32], index: 3, kind: output, shape index: {}]
  %s4 = sld [smem:[#allocation0]]
  $region22: #{t5_relu_ffn.1} parent=0
    _
  %s6 = ssub.s32 1, %s4
  %s7 = scalar_select 0, %s6, %s4
  $region1: #{t5_relu_ffn.1} parent=0
    #allocation2 [shape = 'u8[8192]{0}', space=vmem, size = 0x2000, scoped, tag = 'output window, operand 0, single buffered']
    #allocation3 [shape = 's32[1]{0}', space=sflag, size = 0x4, scoped, tag = 'scoped memory for t5_relu_ffn.1']
    %8 = vsyncpa [#allocation3], 0
    // Predicated region
    $region2: #{t5_relu_ffn.1} parent=1 // pred_check
      _
    $region3: #{t5_relu_ffn.1} parent=1 // pred_check_branch
      %10 = sbr.rel (0) target = $region5
    $region4: #{t5_relu_ffn.1} parent=1 // pred_region
      _
    $region5: #{t5_relu_ffn.1} parent=1 // pred_fallthru
      _
    // Predicated region
    $region6: #{t5_relu_ffn.1} parent=1 // pred_check
      _
    $region7: #{t5_relu_ffn.1} parent=1 // pred_check_branch
      %12 = sbr.rel (0) target = $region9
    $region8: #{t5_relu_ffn.1} parent=1 // pred_region
      _
    $region9: #{t5_relu_ffn.1} parent=1 // pred_fallthru
      _
    // Predicated region
    $region10: #{t5_relu_ffn.1} parent=1 // pred_check
      _
    $region11: #{t5_relu_ffn.1} parent=1 // pred_check_branch
      %14 = sbr.rel (0) target = $region13
    $region12: #{t5_relu_ffn.1} parent=1 // pred_region
      _
    $region13: #{t5_relu_ffn.1} parent=1 // pred_fallthru
      _
    %v16 = vld [vmem:[%s0] sm:$0xff]
    %v17 = vld [vmem:[%s0 + $0x8] sm:$0xff]
    %v18 = vpack.c.bf16 %v17, %v16
    %v19 = vld [vmem:[%s1] sm:$0xf]
    %v20 = vld [vmem:[%s1 + $0x4] sm:$0xf]
    %v21 = vld [vmem:[%s1 + $0x8] sm:$0xf]
    %v22 = vld [vmem:[%s1 + $0xc] sm:$0xf]
    %v27 = vunpack.c.l.b16 %v19
    %v28 = vunpack.c.l.b16 %v20
    %v29 = vunpack.c.l.b16 %v21
    %v30 = vunpack.c.l.b16 %v22
    %v31 = vpack.c.b16 %v28, %v27
    %v32 = vpack.c.b16 %v30, %v29
    %vm35 = vcmask 261120
    %v37 = vsel %vm35, %v18, 0
    %39 = vmatprep.subr.bf16.mxu0 0
    %40 = vmatpush1.bf16.msra.mxu0 0
    %41 = vmatprep.subr.bf16.mxu0 0
    %42 = vmatpush1.bf16.msra.mxu0 0
    %43 = vmatprep.subr.bf16.mxu0 0
    %44 = vmatpush1.bf16.msra.mxu0 0
    %45 = vmatprep.subr.bf16.mxu0 0
    %46 = vmatpush1.bf16.msra.mxu0 0
    %47 = vmatprep.subr.bf16.mxu0 0
    %48 = vmatpush1.bf16.msra.mxu0 0
    %49 = vmatprep.subr.bf16.mxu0 0
    %50 = vmatpush1.bf16.msra.mxu0 0
    %51 = vmatprep.subr.bf16.mxu0 0
    %52 = vmatpush1.bf16.msra.mxu0 %v32
    %53 = vmatprep.subr.bf16.mxu0 0
    %54 = vmatpush1.bf16.msra.mxu0 %v31
    %55 = vmatprep.subr.bf16.mxu0 0
    %56 = vmatpush2.bf16.msra.mxu0 0
    %57 = vmatprep.subr.bf16.mxu0 0
    %58 = vmatpush2.bf16.msra.mxu0 0
    %59 = vmatprep.subr.bf16.mxu0 0
    %60 = vmatpush2.bf16.msra.mxu0 0
    %61 = vmatprep.subr.bf16.mxu0 0
    %62 = vmatpush2.bf16.msra.mxu0 0
    %63 = vmatprep.subr.bf16.mxu0 0
    %64 = vmatpush2.bf16.msra.mxu0 0
    %65 = vmatprep.subr.bf16.mxu0 0
    %66 = vmatpush2.bf16.msra.mxu0 0
    %67 = vmatprep.subr.bf16.mxu0 0
    %68 = vmatpush2.bf16.msra.mxu0 0
    %69 = vmatprep.subr.bf16.mxu0 0
    %70 = vmatpush2.bf16.msra.mxu0 0
    %71 = vmatprep.mubr.bf16.mxu0 0
    %72 = vmatmul.mubr.bf16.gmra.mxu0 %v37
    %v73 = vpop.f32.mrf.mxu0
    %v74 = vadd.f32 0.0, %v73
    %v75 = vpop.f32.mrf.mxu0
    %v76 = vpop.f32.mrf.mxu0
    %v77 = vadd.f32 0.0, %v76
    %v78 = vpop.f32.mrf.mxu0
    %79 = vdwg.mxu0
    %v80 = vmax.f32 %v74, 0.0
    %v81 = vmax.f32 %v77, 0.0
    %v82 = vpack.c.bf16 %v81, %v80
    %v83 = vld [vmem:[%s2] sm:$0xf]
    %v84 = vld [vmem:[%s2 + $0x4] sm:$0xf]
    %v85 = vld [vmem:[%s2 + $0x8] sm:$0xf]
    %v86 = vld [vmem:[%s2 + $0xc] sm:$0xf]
    %v87 = vld [vmem:[%s2 + $0x10] sm:$0xf]
    %v88 = vld [vmem:[%s2 + $0x14] sm:$0xf]
    %v89 = vld [vmem:[%s2 + $0x18] sm:$0xf]
    %v90 = vld [vmem:[%s2 + $0x1c] sm:$0xf]
    %v99 = vunpack.c.l.b16 %v83
    %v100 = vunpack.c.l.b16 %v84
    %v101 = vunpack.c.l.b16 %v85
    %v102 = vunpack.c.l.b16 %v86
    %v103 = vunpack.c.l.b16 %v87
    %v104 = vunpack.c.l.b16 %v88
    %v105 = vunpack.c.l.b16 %v89
    %v106 = vunpack.c.l.b16 %v90
    %v107 = vpack.c.b16 %v100, %v99
    %v108 = vpack.c.b16 %v102, %v101
    %v109 = vpack.c.b16 %v104, %v103
    %v110 = vpack.c.b16 %v106, %v105
    %vm115 = vcmask 523264
    %v117 = vsel %vm115, %v82, 0
    %119 = vmatprep.subr.bf16.mxu0 0
    %120 = vmatpush1.bf16.msra.mxu0 0
    %121 = vmatprep.subr.bf16.mxu0 0
    %122 = vmatpush1.bf16.msra.mxu0 0
    %123 = vmatprep.subr.bf16.mxu0 0
    %124 = vmatpush1.bf16.msra.mxu0 0
    %125 = vmatprep.subr.bf16.mxu0 0
    %126 = vmatpush1.bf16.msra.mxu0 0
    %127 = vmatprep.subr.bf16.mxu0 0
    %128 = vmatpush1.bf16.msra.mxu0 %v110
    %129 = vmatprep.subr.bf16.mxu0 0
    %130 = vmatpush1.bf16.msra.mxu0 %v109
    %131 = vmatprep.subr.bf16.mxu0 0
    %132 = vmatpush1.bf16.msra.mxu0 %v108
    %133 = vmatprep.subr.bf16.mxu0 0
    %134 = vmatpush1.bf16.msra.mxu0 %v107
    %135 = vmatprep.subr.bf16.mxu0 0
    %136 = vmatpush2.bf16.msra.mxu0 0
    %137 = vmatprep.subr.bf16.mxu0 0
    %138 = vmatpush2.bf16.msra.mxu0 0
    %139 = vmatprep.subr.bf16.mxu0 0
    %140 = vmatpush2.bf16.msra.mxu0 0
    %141 = vmatprep.subr.bf16.mxu0 0
    %142 = vmatpush2.bf16.msra.mxu0 0
    %143 = vmatprep.subr.bf16.mxu0 0
    %144 = vmatpush2.bf16.msra.mxu0 0
    %145 = vmatprep.subr.bf16.mxu0 0
    %146 = vmatpush2.bf16.msra.mxu0 0
    %147 = vmatprep.subr.bf16.mxu0 0
    %148 = vmatpush2.bf16.msra.mxu0 0
    %149 = vmatprep.subr.bf16.mxu0 0
    %150 = vmatpush2.bf16.msra.mxu0 0
    %151 = vmatprep.mubr.bf16.mxu0 0
    %152 = vmatmul.mubr.bf16.gmra.mxu0 %v117
    %v153 = vpop.f32.mrf.mxu0
    %v154 = vadd.f32 0.0, %v153
    %v155 = vpop.f32.mrf.mxu0
    %v156 = vpop.f32.mrf.mxu0
    %v157 = vadd.f32 0.0, %v156
    %v158 = vpop.f32.mrf.mxu0
    %159 = vdwg.mxu0
    %160 = vst.msk [vmem:[#allocation2] sm:$0xff] %vm35, %v154
    %161 = vst.msk [vmem:[#allocation2 + $0x8] sm:$0xff] %vm35, %v157
    // Predicated region
    $region14: #{t5_relu_ffn.1} parent=1 // pred_check
      _
    $region15: #{t5_relu_ffn.1} parent=1 // pred_check_branch
      %163 = sbr.rel (0) target = $region17
    $region16: #{t5_relu_ffn.1} parent=1 // pred_region
      %s165 = ssub.s32 256, 256
      %166 = vsyncadd [#allocation3], %s165
      %s167 = sshll.u32 [#allocation2], 4
      %s168 = int_to_ptr.vmem [resolvable:$true] %s167
      %173 = dma.vmem_to_hbm [thread:$0]  %s168, 256, %s3, [#allocation3], 128, 128, 8
    $region17: #{t5_relu_ffn.1} parent=1 // pred_fallthru
      _
    // Predicated region
    $region18: #{t5_relu_ffn.1} parent=1 // pred_check
      _
    $region19: #{t5_relu_ffn.1} parent=1 // pred_check_branch
      %175 = sbr.rel (0) target = $region21
    $region20: #{t5_relu_ffn.1} parent=1 // pred_region
      %176 = dma.done [#allocation3], 256
    $region21: #{t5_relu_ffn.1} parent=1 // pred_fallthru
      _
    %177 = vsyncpa [#allocation3], 1

</llo_original>
